<compile_context>
chip_gen: v7x
topology: tpu7x:2x2x1
jax: 0.10.0
libtpu: 0.0.40
codegen_flags: <defaults>
</compile_context>

<pallas_src>
import math
from functools import partial

import jax
import jax.numpy as jnp
from jax.experimental import pallas as pl
from jax.experimental.pallas import tpu as pltpu


def _drop_path_kernel(x_ref, s_ref, o_ref):
    """One (tb, tf) block: multiply by the per-row keep/scale value."""
    scale = s_ref[...].astype(x_ref.dtype)          # (tb, 1), broadcasts over lanes
    o_ref[...] = x_ref[...] * scale


def drop_path(x, drop_prob=0.0, *, training=False, seed=0,
              target_block_bytes=4 * 1024 * 1024):
    """Pallas TPU DropPath. x: (B, ...) of any rank >= 1."""
    if drop_prob == 0.0 or not training:
        return x                                     # identity, like the reference

    keep_prob = 1.0 - drop_prob
    orig_shape = x.shape
    B = x.shape[0]
    F = int(math.prod(x.shape[1:])) if x.ndim > 1 else 1

    # --- per-sample keep/scale vector (computed once, O(B)) -----------------
    # torch: floor(keep_prob + u) == 1  <=>  u >= drop_prob  (prob = keep_prob)
    u = jax.random.uniform(jax.random.PRNGKey(seed), (B,), dtype=jnp.float32)
    scale = jnp.where(u >= jnp.float32(drop_prob),
                      jnp.float32(1.0 / keep_prob), jnp.float32(0.0))

    # --- choose a lane/sublane-friendly 2-D view (R rows, C cols) -----------
    # When B < 8, fold features into rows so blocks fill all 8 sublanes; each
    # sample then occupies `rs` consecutive rows and its scale is repeated rs x.
    rs = 1
    if B < 8 and F >= 256:
        for cand in range(2, 65):
            if B * cand >= 8 and F % cand == 0 and (F // cand) % 128 == 0:
                rs = cand
                break
    R = B * rs
    C = F // rs
    x2 = x.reshape(R, C)
    scale_rows = jnp.repeat(scale, rs).reshape(R, 1)

    itemsize = jnp.dtype(x.dtype).itemsize

    # --- tile sizes ----------------------------------------------------------
    min_tb = 8 if R >= 8 else R
    if C >= 128:
        if min_tb * C * itemsize <= target_block_bytes:
            tf = C                                    # full feature width
        else:
            tf = (target_block_bytes // (min_tb * itemsize)) // 128 * 128
            tf = int(max(128, min(tf, C)))
    else:
        tf = C

    if R >= 8:
        max_tb = (target_block_bytes // (tf * itemsize)) // 8 * 8
        tb = int(max(8, min(max_tb, (R // 8) * 8)))
    else:
        tb = R

    block_bytes = tb * tf * itemsize
    vmem_limit = int(min(48 * 1024 * 1024,
                         max(16 * 1024 * 1024, 8 * block_bytes + (1 << 20))))

    # --- grid / specs (1-D when a full row block fits, else 2-D) -------------
    if tf == C:
        grid = (pl.cdiv(R, tb),)
        x_spec = pl.BlockSpec((tb, C), lambda i: (i, 0))
        s_spec = pl.BlockSpec((tb, 1), lambda i: (i, 0))
        o_spec = pl.BlockSpec((tb, C), lambda i: (i, 0))
        dims = ("parallel",)
    else:
        grid = (pl.cdiv(R, tb), pl.cdiv(C, tf))
        x_spec = pl.BlockSpec((tb, tf), lambda i, j: (i, j))
        s_spec = pl.BlockSpec((tb, 1), lambda i, j: (i, 0))
        o_spec = pl.BlockSpec((tb, tf), lambda i, j: (i, j))
        dims = ("parallel", "arbitrary")

    out = pl.pallas_call(
        _drop_path_kernel,
        out_shape=jax.ShapeDtypeStruct((R, C), x.dtype),
        grid=grid,
        in_specs=[x_spec, s_spec],
        out_specs=o_spec,
        compiler_params=pltpu.CompilerParams(
            dimension_semantics=dims,
            vmem_limit_bytes=vmem_limit,
        ),
    )(x2, scale_rows)
    return out.reshape(orig_shape)


if __name__ == "__main__":
    key = jax.random.PRNGKey(0)
    kx1, kx2 = jax.random.split(key)

    drop_prob = 0.3
    keep_prob = 1.0 - drop_prob

    # Small ViT/Swin-style activation: (B, C, H, W) = (2, 4, 16, 16), F = 1024.
    x = jax.random.normal(kx1, (2, 4, 16, 16), jnp.float32)

    fwd = jax.jit(partial(drop_path, drop_prob=drop_prob, training=True, seed=0))
    y = jax.block_until_ready(fwd(x))
    assert y.shape == x.shape and y.dtype == x.dtype
    assert bool(jnp.all(jnp.isfinite(y)))

    # Each sample must be either fully dropped (zeros) or scaled by 1/keep_prob.
    for b in range(x.shape[0]):
        dropped = bool(jnp.allclose(y[b], 0.0))
        kept = bool(jnp.allclose(y[b], x[b] / keep_prob, rtol=1e-5, atol=1e-6))
        assert dropped or kept, f"sample {b}: not a valid DropPath output"

    # Non-lane-aligned feature count exercises the boundary-masked tiles.
    x_odd = jax.random.normal(kx2, (2, 5, 7, 9), jnp.float32)    # F = 315
    y_odd = jax.block_until_ready(drop_path(x_odd, drop_prob, training=True, seed=7))
    assert y_odd.shape == x_odd.shape
    for b in range(x_odd.shape[0]):
        dropped = bool(jnp.allclose(y_odd[b], 0.0))
        kept = bool(jnp.allclose(y_odd[b], x_odd[b] / keep_prob, rtol=1e-5, atol=1e-6))
        assert dropped or kept, f"odd sample {b}: not a valid DropPath output"

    # Eval mode / drop_prob == 0 -> exact identity, no kernel launch.
    assert bool(jnp.array_equal(drop_path(x, drop_prob, training=False), x))
    assert bool(jnp.array_equal(drop_path(x, 0.0, training=True), x))

    print("KERNEL_OK")
</pallas_src>

<mosaic_0001>
module attributes {stable_mosaic.version = 11 : i64} {
  func.func @_drop_path_kernel(%arg0: i32, %arg1: memref<8x256xf32, #tpu.memory_space<vmem>>, %arg2: memref<8x1xf32, #tpu.memory_space<vmem>>, %arg3: memref<8x256xf32, #tpu.memory_space<vmem>>) attributes {dimension_semantics = [#tpu.dimension_semantics<parallel>], iteration_bounds = array<i64: 1>, scalar_prefetch = 0 : i64, scratch_operands = 0 : i64, tpu.core_type = #tpu.core_type<tc>, window_params = [{transform_indices = @transform_0, window_bounds = array<i64: 8, 256>}, {transform_indices = @transform_1, window_bounds = array<i64: 8, 1>}, {transform_indices = @transform_2, window_bounds = array<i64: 8, 256>}]} {
    %c0 = arith.constant 0 : index
    %c0_0 = arith.constant 0 : index
    %0 = vector.load %arg2[%c0, %c0_0] : memref<8x1xf32, #tpu.memory_space<vmem>>, vector<8x1xf32>
    %c0_1 = arith.constant 0 : index
    %c0_2 = arith.constant 0 : index
    %1 = vector.load %arg1[%c0_1, %c0_2] : memref<8x256xf32, #tpu.memory_space<vmem>>, vector<8x256xf32>
    %2 = vector.broadcast %0 : vector<8x1xf32> to vector<8x256xf32>
    %3 = arith.mulf %1, %2 : vector<8x256xf32>
    %c0_3 = arith.constant 0 : index
    %c0_4 = arith.constant 0 : index
    %4 = vector.load %arg3[%c0_3, %c0_4] : memref<8x256xf32, #tpu.memory_space<vmem>>, vector<8x256xf32>
    tpu.vector_store %arg3[%c0_3, %c0_4], %3 {strides = array<i32>} : memref<8x256xf32, #tpu.memory_space<vmem>>, vector<8x256xf32>,
    return
  }
  func.func @transform_0(%arg0: i32) -> (i32, i32) {
    %c0_i32 = arith.constant 0 : i32
    %c0_i32_0 = arith.constant 0 : i32
    return %arg0, %c0_i32 : i32, i32
  }
  func.func @transform_1(%arg0: i32) -> (i32, i32) {
    %c0_i32 = arith.constant 0 : i32
    %c0_i32_0 = arith.constant 0 : i32
    return %arg0, %c0_i32 : i32, i32
  }
  func.func @transform_2(%arg0: i32) -> (i32, i32) {
    %c0_i32 = arith.constant 0 : i32
    %c0_i32_0 = arith.constant 0 : i32
    return %arg0, %c0_i32 : i32, i32
  }
}

</mosaic_0001>

<llo_original>
// kernel: drop_path.1
$region0: #{drop_path.1}
  #allocation0 [shape = 'u32[]', space=smem, size = 0x4, offset = 0x4, fixed_abs, tag = 'smem constant byte address 0x4 - core index']
  #allocation1 [shape = 'u32[144,128]{1,0:T(1,128)}', space=vmem, size = 0x12000, scoped, tag = 'internal scratch']
  %s0 = inlined_call_operand.vmem [shape: f32[8,256], index: 0, kind: input, shape index: {}]
  %s1 = inlined_call_operand.vmem [shape: f32[8,1], index: 1, kind: input, shape index: {}]
  %s2 = inlined_call_operand.vmem [shape: f32[8,256], index: 2, kind: output, shape index: {}]
  %s3 = sld [smem:[#allocation0]]
  $region18: #{drop_path.1} parent=0
    _
  %s5 = ssub.s32 1, %s3
  %s6 = scalar_select 0, %s5, %s3
  // Predicated region
  $region2: #{drop_path.1} parent=0 // pred_check
    _
  $region3: #{drop_path.1} parent=0 // pred_check_branch
    %8 = sbr.rel (0) target = $region5
  $region4: #{drop_path.1} parent=0 // pred_region
    _
  $region5: #{drop_path.1} parent=0 // pred_fallthru
    _
  // Predicated region
  $region6: #{drop_path.1} parent=0 // pred_check
    _
  $region7: #{drop_path.1} parent=0 // pred_check_branch
    %10 = sbr.rel (0) target = $region9
  $region8: #{drop_path.1} parent=0 // pred_region
    _
  $region9: #{drop_path.1} parent=0 // pred_fallthru
    _
  %v11 = vld [vmem:[%s1] sm:$0xff]
  %v12 = vld [vmem:[%s0] sm:$0xff]
  %v13 = vld [vmem:[%s0 + $0x8] sm:$0xff]
  %15 = vset.pattern.permute.xlu0 0
  %16 = vperm.xlu0 %15, %v11
  %v17 = vpop.permute.xlu0 %16
  %v19 = vmul.f32 %v12, %v17
  %v20 = vmul.f32 %v13, %v17
  %21 = vst [vmem:[%s2] sm:$0xff] %v19
  %22 = vst [vmem:[%s2 + $0x8] sm:$0xff] %v20
  // Predicated region
  $region10: #{drop_path.1} parent=0 // pred_check
    _
  $region11: #{drop_path.1} parent=0 // pred_check_branch
    %24 = sbr.rel (0) target = $region13
  $region12: #{drop_path.1} parent=0 // pred_region
    _
  $region13: #{drop_path.1} parent=0 // pred_fallthru
    _
  // Predicated region
  $region14: #{drop_path.1} parent=0 // pred_check
    _
  $region15: #{drop_path.1} parent=0 // pred_check_branch
    %26 = sbr.rel (0) target = $region17
  $region16: #{drop_path.1} parent=0 // pred_region
    _
  $region17: #{drop_path.1} parent=0 // pred_fallthru
    _

</llo_original>
